<compile_context>
chip_gen: v7x
topology: tpu7x:2x2x1
jax: 0.10.0
libtpu: 0.0.40
codegen_flags: <defaults>
</compile_context>

<pallas_src>
import functools

import jax
import jax.numpy as jnp
from jax.experimental import pallas as pl
from jax.experimental.pallas import tpu as pltpu

SCALE = 20.0       # the torch forward hardcodes * 20 (== 1 / 0.05)
BIG_NEG = 1e12     # torch masking constant (used by the pure-JAX reference)
EPS = 1e-12        # F.normalize eps


def _round_up(x, m):
    return ((x + m - 1) // m) * m


def _pick_tile(n, align, pref):
    """Largest divisor t of n with t <= pref and t % align == 0, else n."""
    if n <= pref or n % align != 0:
        return n
    t = (pref // align) * align
    while t >= align:
        if n % t == 0:
            return t
        t -= align
    return n


def _vmem_bytes():
    try:
        return int(pltpu.get_tpu_info().vmem_capacity_bytes)
    except Exception:
        return 64 << 20          # be conservative (v7x size) if query fails


def _vmem_limit(est_bytes):
    # 2x headroom over the estimated tile footprint, clamped generation-aware:
    # v7x has 64 MiB physical VMEM per TensorCore, v5e/v6e have 128 MiB.
    cap = (40 << 20) if _vmem_bytes() <= (64 << 20) else (64 << 20)
    return int(min(max(2 * est_bytes + (2 << 20), 16 << 20), cap))


def _compiler_params(semantics, est_bytes):
    return pltpu.CompilerParams(dimension_semantics=semantics,
                                vmem_limit_bytes=_vmem_limit(est_bytes))


# ------------------------------------------------------------------ pass 1 --
def _pair_cosine_kernel(eo_ref, s_ref, *, d):
    # eo_ref: (tm, 2D) block of y_pred.reshape(N, 2D); lanes [0,D) hold the
    # "even" embedding, lanes [D,2D) the "odd" one -> no strided HBM copies.
    e = eo_ref[:, pl.ds(0, d)].astype(jnp.float32)      # (tm, D)
    o = eo_ref[:, pl.ds(d, d)].astype(jnp.float32)      # (tm, D)
    e_sq = jnp.sum(e * e, axis=1, keepdims=True)        # (tm, 1)
    o_sq = jnp.sum(o * o, axis=1, keepdims=True)
    dot = jnp.sum(e * o, axis=1, keepdims=True)
    # F.normalize: x / max(||x||, eps)  ==  x * rsqrt(max(||x||^2, eps^2))
    inv = (jax.lax.rsqrt(jnp.maximum(e_sq, EPS * EPS)) *
           jax.lax.rsqrt(jnp.maximum(o_sq, EPS * EPS)))
    s_ref[...] = dot * inv * SCALE


def _pair_cosine(eo, d):
    n, d2 = eo.shape
    itemsize = jnp.dtype(eo.dtype).itemsize
    # dtype-aware sublane alignment (f32:8, bf16:16, int8/fp8:32)
    align = 32 if itemsize == 1 else (16 if itemsize == 2 else 8)
    # double-buffered input-block budget (generation-aware)
    budget = (16 << 20) if _vmem_bytes() <= (64 << 20) else (28 << 20)
    rows = max(align, budget // max(1, 2 * d2 * itemsize))
    cap = min(rows, 1024)
    if n <= cap:
        tm = n                        # full-extent rows: always a legal block
    else:
        tm = max(align, (cap // align) * align)
    grid = (pl.cdiv(n, tm),)          # boundary block handles n % tm != 0
    est = 2 * tm * d2 * itemsize + 2 * tm * d2 * 4
    return pl.pallas_call(
        functools.partial(_pair_cosine_kernel, d=d),
        grid=grid,
        in_specs=[pl.BlockSpec((tm, d2), lambda i: (i, 0))],
        out_specs=pl.BlockSpec((tm, 1), lambda i: (i, 0)),
        out_shape=jax.ShapeDtypeStruct((n, 1), jnp.float32),
        compiler_params=_compiler_params(("parallel",), est),
    )(eo)


# ------------------------------------------------------------------ pass 2 --
def _lse_kernel(s_col_ref, lab_col_ref, eneg_row_ref, lab_row_ref, out_ref,
                acc_sc):
    j = pl.program_id(1)

    @pl.when(j == 0)
    def _():
        acc_sc[...] = jnp.zeros_like(acc_sc)

    # |s| <= 20 so exp(s[a]-s[b]) never overflows f32: no online-max machinery.
    # Inner N^2 loop is pure VALU: compare, select, add-reduce (no EUP work).
    mask = lab_col_ref[...] < lab_row_ref[...]                  # (tm, tn)
    contrib = jnp.where(mask, eneg_row_ref[...], 0.0)           # (tm, tn)
    acc_sc[...] += jnp.sum(contrib, axis=1, keepdims=True)      # (tm, 1)

    @pl.when(j == pl.num_programs(1) - 1)
    def _():
        # rows with no valid partner give log(0) = -inf; the wrapper's final
        # logsumexp (with the prepended 0) handles -inf without NaN.
        out_ref[...] = s_col_ref[...] + jnp.log(acc_sc[...])


def _tiled_lse(s_col, lab_col, eneg_row, lab_row):
    n = s_col.shape[0]               # padded: multiple of 128
    tn = _pick_tile(n, 128, 2048)    # lane (column) tile
    # keep >= 2 row tiles so the "parallel" axis shards across v7x's 2 cores
    tm = _pick_tile(n, 8, max(8, min(512, n // 2)))
    nr, nc = n // tm, n // tn
    est = 3 * tm * tn * 4 + 8 * (tm + tn) * 4
    return pl.pallas_call(
        _lse_kernel,
        grid=(nr, nc),
        in_specs=[
            pl.BlockSpec((tm, 1), lambda i, j: (i, 0)),
            pl.BlockSpec((tm, 1), lambda i, j: (i, 0)),
            pl.BlockSpec((1, tn), lambda i, j: (0, j)),
            pl.BlockSpec((1, tn), lambda i, j: (0, j)),
        ],
        out_specs=pl.BlockSpec((tm, 1), lambda i, j: (i, 0)),
        out_shape=jax.ShapeDtypeStruct((n, 1), jnp.float32),
        scratch_shapes=[pltpu.VMEM((tm, 1), jnp.float32)],
        compiler_params=_compiler_params(("parallel", "arbitrary"), est),
    )(s_col, lab_col, eneg_row, lab_row)


# ----------------------------------------------------------------- wrapper --
def cosent_loss(y_true, y_pred):
    two_n, d = y_pred.shape
    n = two_n // 2
    # NB: labels compared in f32; integer labels with |v| > 2^24 are an edge
    # case of the float cast (same as the previous version).
    labels = y_true[::2, 0].astype(jnp.float32)                 # (N,) tiny
    eo = y_pred.reshape(n, 2 * d)                               # free reshape

    s = _pair_cosine(eo, d).reshape(-1)                         # (N,) f32

    # pad to lane alignment for pass 2; neutral pads contribute exactly 0:
    #   padded rows:  label=+inf  => never < anything => acc stays 0
    #   padded cols:  label=-inf  => nothing < it; exp(-s) padded with 0
    n_pad = _round_up(max(n, 1), 128)
    pad = n_pad - n
    s_col = jnp.pad(s, (0, pad)).reshape(n_pad, 1)
    lab_col = jnp.pad(labels, (0, pad),
                      constant_values=float("inf")).reshape(n_pad, 1)
    eneg_row = jnp.pad(jnp.exp(-s), (0, pad)).reshape(1, n_pad)
    lab_row = jnp.pad(labels, (0, pad),
                      constant_values=float("-inf")).reshape(1, n_pad)

    row_lse = _tiled_lse(s_col, lab_col, eneg_row, lab_row).reshape(-1)
    # fold per-row LSEs with the prepended 0 (torch.cat([0], ...)); O(N) XLA.
    terms = jnp.concatenate([jnp.zeros((1,), jnp.float32), row_lse])
    return jax.nn.logsumexp(terms)


def cosent_ref(y_true, y_pred):
    """Pure-JAX reference matching the PyTorch module line by line."""
    labels = y_true[::2, 0]
    mask = (labels[:, None] < labels[None, :]).astype(jnp.float32)
    p = y_pred.astype(jnp.float32)
    p = p / jnp.maximum(jnp.linalg.norm(p, axis=1, keepdims=True), EPS)
    s = jnp.sum(p[0::2] * p[1::2], axis=1) * SCALE
    z = s[:, None] - s[None, :]
    z = z - (1.0 - mask) * BIG_NEG
    z = jnp.concatenate([jnp.zeros((1,), jnp.float32), z.reshape(-1)])
    return jax.nn.logsumexp(z)


if __name__ == "__main__":
    key = jax.random.PRNGKey(0)
    k1, k2 = jax.random.split(key)
    two_n, d = 8, 32                              # 2N rows, hidden dim D
    y_true = jax.random.randint(k1, (two_n, 1), 0, 3).astype(jnp.float32)
    y_pred = jax.random.normal(k2, (two_n, d), dtype=jnp.float32)

    out = jax.block_until_ready(cosent_loss(y_true, y_pred))
    ref = cosent_ref(y_true, y_pred)

    assert bool(jnp.isfinite(out)), f"non-finite output: {out}"
    assert bool(jnp.allclose(out, ref, rtol=1e-4, atol=1e-4)), (out, ref)
    print("KERNEL_OK")
</pallas_src>

<mosaic_0001>
module attributes {stable_mosaic.version = 11 : i64} {
  func.func @_pair_cosine_kernel(%arg0: i32, %arg1: memref<4x64xf32, #tpu.memory_space<vmem>>, %arg2: memref<4x1xf32, #tpu.memory_space<vmem>>) attributes {dimension_semantics = [#tpu.dimension_semantics<parallel>], iteration_bounds = array<i64: 1>, scalar_prefetch = 0 : i64, scratch_operands = 0 : i64, tpu.core_type = #tpu.core_type<tc>, window_params = [{transform_indices = @transform_0, window_bounds = array<i64: 4, 64>}, {transform_indices = @transform_1, window_bounds = array<i64: 4, 1>}]} {
    %c0 = arith.constant 0 : index
    %c0_0 = arith.constant 0 : index
    %0 = vector.load %arg1[%c0, %c0_0] : memref<4x64xf32, #tpu.memory_space<vmem>>, vector<4x32xf32>
    %c0_1 = arith.constant 0 : index
    %c32 = arith.constant 32 : index
    %1 = vector.load %arg1[%c0_1, %c32] : memref<4x64xf32, #tpu.memory_space<vmem>>, vector<4x32xf32>
    %2 = arith.mulf %0, %0 : vector<4x32xf32>
    %cst = arith.constant dense<0.000000e+00> : vector<4xf32>
    %3 = vector.multi_reduction <add>, %2, %cst [1] : vector<4x32xf32> to vector<4xf32>
    %4 = vector.shape_cast %3 : vector<4xf32> to vector<4x1xf32>
    %5 = arith.mulf %1, %1 : vector<4x32xf32>
    %cst_2 = arith.constant dense<0.000000e+00> : vector<4xf32>
    %6 = vector.multi_reduction <add>, %5, %cst_2 [1] : vector<4x32xf32> to vector<4xf32>
    %7 = vector.shape_cast %6 : vector<4xf32> to vector<4x1xf32>
    %8 = arith.mulf %0, %1 : vector<4x32xf32>
    %cst_3 = arith.constant dense<0.000000e+00> : vector<4xf32>
    %9 = vector.multi_reduction <add>, %8, %cst_3 [1] : vector<4x32xf32> to vector<4xf32>
    %10 = vector.shape_cast %9 : vector<4xf32> to vector<4x1xf32>
    %cst_4 = arith.constant 1.000000e-24 : f32
    %11 = vector.broadcast %cst_4 : f32 to vector<4x1xf32>
    %12 = arith.maximumf %4, %11 : vector<4x1xf32>
    %13 = math.rsqrt %12 : vector<4x1xf32>
    %cst_5 = arith.constant 1.000000e-24 : f32
    %14 = vector.broadcast %cst_5 : f32 to vector<4x1xf32>
    %15 = arith.maximumf %7, %14 : vector<4x1xf32>
    %16 = math.rsqrt %15 : vector<4x1xf32>
    %17 = arith.mulf %13, %16 : vector<4x1xf32>
    %18 = arith.mulf %10, %17 : vector<4x1xf32>
    %cst_6 = arith.constant 2.000000e+01 : f32
    %19 = vector.broadcast %cst_6 : f32 to vector<4x1xf32>
    %20 = arith.mulf %18, %19 : vector<4x1xf32>
    %c0_7 = arith.constant 0 : index
    %c0_8 = arith.constant 0 : index
    %21 = vector.load %arg2[%c0_7, %c0_8] : memref<4x1xf32, #tpu.memory_space<vmem>>, vector<4x1xf32>
    tpu.vector_store %arg2[%c0_7, %c0_8], %20 {strides = array<i32>} : memref<4x1xf32, #tpu.memory_space<vmem>>, vector<4x1xf32>,
    return
  }
  func.func @transform_0(%arg0: i32) -> (i32, i32) {
    %c0_i32 = arith.constant 0 : i32
    %c0_i32_0 = arith.constant 0 : i32
    return %arg0, %c0_i32 : i32, i32
  }
  func.func @transform_1(%arg0: i32) -> (i32, i32) {
    %c0_i32 = arith.constant 0 : i32
    %c0_i32_0 = arith.constant 0 : i32
    return %arg0, %c0_i32 : i32, i32
  }
}

</mosaic_0001>

<llo_original>
// kernel: tpu_custom_call.1
$region0: #{tpu_custom_call.1}
  #allocation0 [shape = 'u32[]', space=smem, size = 0x4, offset = 0x4, fixed_abs, tag = 'smem constant byte address 0x4 - core index']
  #allocation1 [shape = 'u32[144,128]{1,0:T(1,128)}', space=vmem, size = 0x12000, scoped, tag = 'internal scratch']
  %s0 = inlined_call_operand.hbm [shape: f32[4,64], index: 0, kind: input, shape index: {}]
  %s1 = inlined_call_operand.vmem [shape: f32[4,1], index: 1, kind: output, shape index: {}]
  %s2 = sld [smem:[#allocation0]]
  $region18: #{tpu_custom_call.1} parent=0
    _
  %s4 = ssub.s32 1, %s2
  %s5 = scalar_select 0, %s4, %s2
  $region1: #{tpu_custom_call.1} parent=0
    #allocation2 [shape = 'u8[2048]{0}', space=vmem, size = 0x800, scoped, tag = 'input window, operand 0, single buffered']
    #allocation3 [shape = 's32[1]{0}', space=sflag, size = 0x4, scoped, tag = 'scoped memory for tpu_custom_call.1']
    %6 = vsyncpa [#allocation3], 0
    // Predicated region
    $region2: #{tpu_custom_call.1} parent=1 // pred_check
      _
    $region3: #{tpu_custom_call.1} parent=1 // pred_check_branch
      %8 = sbr.rel (0) target = $region5
    $region4: #{tpu_custom_call.1} parent=1 // pred_region
      %s10 = ssub.s32 64, 64
      %11 = vsyncadd [#allocation3], %s10
      %s13 = sshll.u32 [#allocation2], 4
      %s14 = int_to_ptr.vmem [resolvable:$true] %s13
      %16 = dma.hbm_to_vmem [thread:$0]  %s0, 64, %s14, [#allocation3]
    $region5: #{tpu_custom_call.1} parent=1 // pred_fallthru
      _
    // Predicated region
    $region6: #{tpu_custom_call.1} parent=1 // pred_check
      _
    $region7: #{tpu_custom_call.1} parent=1 // pred_check_branch
      %18 = sbr.rel (0) target = $region9
    $region8: #{tpu_custom_call.1} parent=1 // pred_region
      %19 = dma.done [#allocation3], 64
    $region9: #{tpu_custom_call.1} parent=1 // pred_fallthru
      _
    %v20 = vld [vmem:[#allocation2] sm:$0xf]
    %v21 = vmul.f32 %v20, %v20
    %vm22 = vcmask 257024
    %v23 = vsel %vm22, %v21, 0.0
    %24 = vadd.xlane.f32.xlu0 %v23
    %v25 = vpop.xlane.xlu0 %24
    %27 = vrot.lane.b32.xlu0 %v21, 96
    %v28 = vpop.permute.xlu0 %27
    %v30 = vsel %vm22, %v28, 0.0
    %31 = vadd.xlane.f32.xlu0 %v30
    %v32 = vpop.xlane.xlu0 %31
    %34 = vrot.lane.b32.xlu0 %v20, 96
    %v35 = vpop.permute.xlu0 %34
    %v37 = vmul.f32 %v20, %v35
    %v38 = vsel %vm22, %v37, 0.0
    %39 = vadd.xlane.f32.xlu0 %v38
    %v40 = vpop.xlane.xlu0 %39
    %v41 = vmax.f32 %v25, 1e-24
    %v42 = vrsqrt.pop %v41
    %v43 = vmax.f32 %v32, 1e-24
    %v44 = vrsqrt.pop %v43
    %v45 = vmul.f32 %v42, %v44
    %v46 = vmul.f32 %v40, %v45
    %v47 = vmul.f32 %v46, 20.0
    %vm48 = vcmask 3072
    %49 = vst.msk [vmem:[%s1] sm:$0xf] %vm48, %v47
    // Predicated region
    $region10: #{tpu_custom_call.1} parent=1 // pred_check
      _
    $region11: #{tpu_custom_call.1} parent=1 // pred_check_branch
      %51 = sbr.rel (0) target = $region13
    $region12: #{tpu_custom_call.1} parent=1 // pred_region
      _
    $region13: #{tpu_custom_call.1} parent=1 // pred_fallthru
      _
    // Predicated region
    $region14: #{tpu_custom_call.1} parent=1 // pred_check
      _
    $region15: #{tpu_custom_call.1} parent=1 // pred_check_branch
      %53 = sbr.rel (0) target = $region17
    $region16: #{tpu_custom_call.1} parent=1 // pred_region
      _
    $region17: #{tpu_custom_call.1} parent=1 // pred_fallthru
      _
    %54 = vsyncpa [#allocation3], 1

</llo_original>
